<compile_context>
chip_gen: v7x
topology: tpu7x:2x2x1
jax: 0.10.0
libtpu: 0.0.40
codegen_flags: <defaults>
</compile_context>

<pallas_src>
import jax
import jax.numpy as jnp
from jax.experimental import pallas as pl
from jax.experimental.pallas import tpu as pltpu

_BN_EPS = 1e-5
_LANE = 128        # output-channel padding -> unmasked full-lane stores
_ROW_ALIGN = 16    # bf16 sublane packing granularity for row tiles
_TM_CAP = 512      # max rows per grid step


def _round_up(a, b):
    return ((a + b - 1) // b) * b


def _fused_dense_bn_prelu_kernel(alpha_ref, x_ref, w_ref, sb_ref, o_ref):
    # fc: (tm, in_c) contracted with W (out_pad, in_c) along in_c -> (tm, out_pad)
    # bf16 operands, f32 accumulation on the MXU; no wrapper-side transpose.
    y = jax.lax.dot_general(
        x_ref[...], w_ref[...],
        dimension_numbers=(((1,), (1,)), ((), ())),
        preferred_element_type=jnp.float32)

    # Folded BatchNorm1d (eval): per-row affine, broadcast along lanes.
    scale = sb_ref[:, 0:1]
    bias = sb_ref[:, 1:2]
    y = y * scale + bias

    # PReLU with a single shared parameter (scalar from SMEM).
    alpha = alpha_ref[0]
    o_ref[...] = jnp.where(y > 0.0, y, alpha * y).astype(o_ref.dtype)


def _fold_bn(gamma, beta, mean, var):
    scale = jnp.asarray(gamma, jnp.float32) * jax.lax.rsqrt(
        jnp.asarray(var, jnp.float32) + _BN_EPS)
    bias = jnp.asarray(beta, jnp.float32) - jnp.asarray(mean, jnp.float32) * scale
    return scale, bias


def prepare_dense_layer_params(params, num_users, num_items):
    """One-time (model-load) parameter preparation. Keep OUT of the hot path."""
    w = jnp.asarray(params["w"], jnp.float32)        # (out_c, in_c) PyTorch layout
    out_c, in_c = w.shape

    # Zero-pad fc output channels to a lane multiple -> lane-dense output slab.
    out_pad = _round_up(out_c, _LANE)
    w_padded = jnp.zeros((out_pad, in_c), jnp.bfloat16)
    w_padded = w_padded.at[:out_c].set(w.astype(jnp.bfloat16))

    scale_u, bias_u = _fold_bn(params["bn_u_gamma"], params["bn_u_beta"],
                               params["bn_u_mean"], params["bn_u_var"])
    scale_i, bias_i = _fold_bn(params["bn_i_gamma"], params["bn_i_beta"],
                               params["bn_i_mean"], params["bn_i_var"])
    if scale_u.shape[0] != num_users or scale_i.shape[0] != num_items:
        raise ValueError("BatchNorm parameter lengths do not match row counts")

    # Merged per-row (scale | bias): one (N, 2) operand, one DMA per row tile.
    sb = jnp.stack([jnp.concatenate([scale_u, scale_i]),
                    jnp.concatenate([bias_u, bias_i])], axis=1)

    alpha = jnp.asarray(params["prelu_alpha"], jnp.float32).reshape(1)

    return {"w": w_padded, "sb": sb, "alpha": alpha,
            "in_c": in_c, "out_c": out_c,
            "num_users": num_users, "num_items": num_items}


def _pick_row_tile(n_total):
    # >=2 grid steps once n_total >= 2*_ROW_ALIGN (v7x: rows shard across both
    # TensorCores via the "parallel" axis); capped at _TM_CAP rows per step.
    tm = min(_TM_CAP, _round_up(max(pl.cdiv(n_total, 2), 1), _ROW_ALIGN))
    if tm > n_total:
        tm = n_total   # tiny inputs: single full-extent block (always legal)
    return tm


def dense_layer_forward(u_features, i_features, prep):
    """Fused DenseLayer.forward for both branches in a single pallas_call."""
    n_u = u_features.shape[0]
    n_i = i_features.shape[0]
    if n_u != prep["num_users"] or n_i != prep["num_items"]:
        raise ValueError("feature row counts do not match prepared BN params")

    # TODO(synk): nn.Dropout is identity in eval mode; training-mode dropout
    # (stateful RNG masking) is not reproduced here.
    x = jnp.concatenate([u_features.astype(jnp.bfloat16),
                         i_features.astype(jnp.bfloat16)], axis=0)
    # TODO(synk): at production N, replace the concat with a scalar-prefetch
    # row-offset table so activations are not re-materialized per call.
    n_total, in_c = x.shape
    w = prep["w"]
    out_pad = w.shape[0]

    tm = _pick_row_tile(n_total)
    grid = (pl.cdiv(n_total, tm),)

    out = pl.pallas_call(
        _fused_dense_bn_prelu_kernel,
        out_shape=jax.ShapeDtypeStruct((n_total, out_pad), jnp.float32),
        grid=grid,
        in_specs=[
            pl.BlockSpec(memory_space=pltpu.MemorySpace.SMEM),   # alpha scalar
            pl.BlockSpec((tm, in_c), lambda m: (m, 0)),          # x rows (bf16)
            pl.BlockSpec((out_pad, in_c), lambda m: (0, 0)),     # W resident (bf16)
            pl.BlockSpec((tm, 2), lambda m: (m, 0)),             # merged scale|bias
        ],
        out_specs=pl.BlockSpec((tm, out_pad), lambda m: (m, 0)),  # lane-dense slab
        compiler_params=pltpu.CompilerParams(
            dimension_semantics=("parallel",)),
    )(prep["alpha"], x, w, prep["sb"])

    out = out[:, :prep["out_c"]]
    return out[:n_u], out[n_u:]


def _reference_branch(x, w, gamma, beta, mean, var, alpha, matmul_dtype):
    xq = jnp.asarray(x).astype(matmul_dtype).astype(jnp.float32)
    wq = jnp.asarray(w).astype(matmul_dtype).astype(jnp.float32)
    y = xq @ wq.T
    y = (y - mean[:, None]) * jax.lax.rsqrt(var[:, None] + _BN_EPS) \
        * gamma[:, None] + beta[:, None]
    return jnp.where(y > 0, y, alpha * y)


if __name__ == "__main__":
    # config: hidden_size=[32, 32], num_users=8, num_nodes=16 (=> 8 items),
    #         accum='sum', dense_bn=True, dense_relu=True, bias=False.
    in_c, out_c = 32, 32
    num_users, num_items = 8, 8

    key = jax.random.PRNGKey(0)
    keys = jax.random.split(key, 12)
    (k_u, k_i, k_w,
     k_ug, k_ub, k_um, k_uv,
     k_ig, k_ib, k_im, k_iv, _) = keys

    u_features = jax.random.normal(k_u, (num_users, in_c), jnp.float32)
    i_features = jax.random.normal(k_i, (num_items, in_c), jnp.float32)

    params = {
        "w": jax.random.normal(k_w, (out_c, in_c), jnp.float32) * 0.1,
        "bn_u_gamma": 1.0 + 0.05 * jax.random.normal(k_ug, (num_users,), jnp.float32),
        "bn_u_beta": 0.05 * jax.random.normal(k_ub, (num_users,), jnp.float32),
        "bn_u_mean": 0.1 * jax.random.normal(k_um, (num_users,), jnp.float32),
        "bn_u_var": 1.0 + 0.1 * jax.random.uniform(k_uv, (num_users,), jnp.float32),
        "bn_i_gamma": 1.0 + 0.05 * jax.random.normal(k_ig, (num_items,), jnp.float32),
        "bn_i_beta": 0.05 * jax.random.normal(k_ib, (num_items,), jnp.float32),
        "bn_i_mean": 0.1 * jax.random.normal(k_im, (num_items,), jnp.float32),
        "bn_i_var": 1.0 + 0.1 * jax.random.uniform(k_iv, (num_items,), jnp.float32),
        "prelu_alpha": jnp.float32(0.25),   # PyTorch PReLU default init
    }

    # One-time prep (model load): BN fold, scale|bias merge, W pad + bf16 cast.
    prep = prepare_dense_layer_params(params, num_users, num_items)
    prep = jax.tree_util.tree_map(
        lambda a: jax.block_until_ready(a) if isinstance(a, jax.Array) else a, prep)

    u_out, i_out = dense_layer_forward(u_features, i_features, prep)
    jax.block_until_ready((u_out, i_out))

    # Tight check vs. a reference that mirrors the kernel's bf16 MXU inputs.
    u_ref_bf = _reference_branch(u_features, params["w"], params["bn_u_gamma"],
                                 params["bn_u_beta"], params["bn_u_mean"],
                                 params["bn_u_var"], params["prelu_alpha"],
                                 jnp.bfloat16)
    i_ref_bf = _reference_branch(i_features, params["w"], params["bn_i_gamma"],
                                 params["bn_i_beta"], params["bn_i_mean"],
                                 params["bn_i_var"], params["prelu_alpha"],
                                 jnp.bfloat16)
    assert jnp.allclose(u_out, u_ref_bf, atol=1e-4, rtol=1e-4)
    assert jnp.allclose(i_out, i_ref_bf, atol=1e-4, rtol=1e-4)

    # Loose check vs. the pure-f32 PyTorch-semantics reference (bf16 MXU inputs
    # introduce ~0.4% relative quantization of the matmul operands).
    u_ref_f32 = _reference_branch(u_features, params["w"], params["bn_u_gamma"],
                                  params["bn_u_beta"], params["bn_u_mean"],
                                  params["bn_u_var"], params["prelu_alpha"],
                                  jnp.float32)
    i_ref_f32 = _reference_branch(i_features, params["w"], params["bn_i_gamma"],
                                  params["bn_i_beta"], params["bn_i_mean"],
                                  params["bn_i_var"], params["prelu_alpha"],
                                  jnp.float32)
    assert jnp.allclose(u_out, u_ref_f32, atol=5e-2, rtol=5e-2)
    assert jnp.allclose(i_out, i_ref_f32, atol=5e-2, rtol=5e-2)

    print("KERNEL_OK")
</pallas_src>

<mosaic_0001>
module attributes {stable_mosaic.version = 11 : i64} {
  func.func @_fused_dense_bn_prelu_kernel(%arg0: i32, %arg1: memref<1xf32, #tpu.memory_space<smem>>, %arg2: memref<16x32xbf16, #tpu.memory_space<vmem>>, %arg3: memref<128x32xbf16, #tpu.memory_space<vmem>>, %arg4: memref<16x2xf32, #tpu.memory_space<vmem>>, %arg5: memref<16x128xf32, #tpu.memory_space<vmem>>) attributes {dimension_semantics = [#tpu.dimension_semantics<parallel>], iteration_bounds = array<i64: 1>, scalar_prefetch = 0 : i64, scratch_operands = 0 : i64, tpu.core_type = #tpu.core_type<tc>, window_params = [{transform_indices = @transform_0, window_bounds = array<i64: 1>}, {transform_indices = @transform_1, window_bounds = array<i64: 16, 32>}, {pipeline_mode = #tpu.pipeline_mode<synchronous>, transform_indices = @transform_2, window_bounds = array<i64: 128, 32>}, {transform_indices = @transform_3, window_bounds = array<i64: 16, 2>}, {transform_indices = @transform_4, window_bounds = array<i64: 16, 128>}]} {
    %c0 = arith.constant 0 : index
    %c0_0 = arith.constant 0 : index
    %0 = vector.load %arg2[%c0, %c0_0] : memref<16x32xbf16, #tpu.memory_space<vmem>>, vector<16x32xbf16>
    %c0_1 = arith.constant 0 : index
    %c0_2 = arith.constant 0 : index
    %1 = vector.load %arg3[%c0_1, %c0_2] : memref<128x32xbf16, #tpu.memory_space<vmem>>, vector<128x32xbf16>
    %cst = arith.constant dense<0.000000e+00> : vector<16x128xf32>
    %2 = tpu.matmul %0, %1, %cst {dimension_numbers = #tpu.dot_dimension_numbers<[1], [1], [0], [0], [0, 0, 1, 0], [], []>} : vector<16x32xbf16>, vector<128x32xbf16>, vector<16x128xf32> -> vector<16x128xf32>
    %c0_3 = arith.constant 0 : index
    %c0_4 = arith.constant 0 : index
    %3 = vector.load %arg4[%c0_3, %c0_4] : memref<16x2xf32, #tpu.memory_space<vmem>>, vector<16x1xf32>
    %c0_5 = arith.constant 0 : index
    %c1 = arith.constant 1 : index
    %4 = vector.load %arg4[%c0_5, %c1] : memref<16x2xf32, #tpu.memory_space<vmem>>, vector<16x1xf32>
    %5 = vector.broadcast %3 : vector<16x1xf32> to vector<16x128xf32>
    %6 = arith.mulf %2, %5 : vector<16x128xf32>
    %7 = vector.broadcast %4 : vector<16x1xf32> to vector<16x128xf32>
    %8 = arith.addf %6, %7 : vector<16x128xf32>
    %c0_6 = arith.constant 0 : index
    %9 = memref.load %arg1[%c0_6] : memref<1xf32, #tpu.memory_space<smem>>
    %cst_7 = arith.constant 0.000000e+00 : f32
    %10 = vector.broadcast %cst_7 : f32 to vector<16x128xf32>
    %11 = arith.cmpf ogt, %8, %10 : vector<16x128xf32>
    %12 = vector.broadcast %9 : f32 to vector<16x128xf32>
    %13 = arith.mulf %12, %8 : vector<16x128xf32>
    %14 = arith.select %11, %8, %13 : vector<16x128xi1>, vector<16x128xf32>
    %c0_8 = arith.constant 0 : index
    %c0_9 = arith.constant 0 : index
    %15 = vector.load %arg5[%c0_8, %c0_9] : memref<16x128xf32, #tpu.memory_space<vmem>>, vector<16x128xf32>
    tpu.vector_store %arg5[%c0_8, %c0_9], %14 {strides = array<i32>} : memref<16x128xf32, #tpu.memory_space<vmem>>, vector<16x128xf32>,
    return
  }
  func.func @transform_0(%arg0: i32) -> i32 {
    %c0_i32 = arith.constant 0 : i32
    %c0_i32_0 = arith.constant 0 : i32
    return %c0_i32 : i32
  }
  func.func @transform_1(%arg0: i32) -> (i32, i32) {
    %c0_i32 = arith.constant 0 : i32
    %c0_i32_0 = arith.constant 0 : i32
    return %arg0, %c0_i32 : i32, i32
  }
  func.func @transform_2(%arg0: i32) -> (i32, i32) {
    %c0_i32 = arith.constant 0 : i32
    %c0_i32_0 = arith.constant 0 : i32
    %c0_i32_1 = arith.constant 0 : i32
    return %c0_i32, %c0_i32_0 : i32, i32
  }
  func.func @transform_3(%arg0: i32) -> (i32, i32) {
    %c0_i32 = arith.constant 0 : i32
    %c0_i32_0 = arith.constant 0 : i32
    return %arg0, %c0_i32 : i32, i32
  }
  func.func @transform_4(%arg0: i32) -> (i32, i32) {
    %c0_i32 = arith.constant 0 : i32
    %c0_i32_0 = arith.constant 0 : i32
    return %arg0, %c0_i32 : i32, i32
  }
}

</mosaic_0001>

<llo_original>
// kernel: tpu_custom_call.1
$region0: #{tpu_custom_call.1}
  #allocation0 [shape = 'u32[]', space=smem, size = 0x4, offset = 0x4, fixed_abs, tag = 'smem constant byte address 0x4 - core index']
  #allocation1 [shape = 'u32[144,128]{1,0:T(1,128)}', space=vmem, size = 0x12000, scoped, tag = 'internal scratch']
  #allocation2 [shape = 'f32[1]{0:T(128)S(6)}', space=smem, size = 0x200, scoped, tag = 'scoped memory for tpu_custom_call.1']
  %s0 = inlined_call_operand.<no memory space> [shape: f32[1], index: 0, kind: input, shape index: {}]
  %s1 = inlined_call_operand.vmem [shape: bf16[16,32], index: 1, kind: input, shape index: {}]
  %s2 = inlined_call_operand.vmem [shape: bf16[128,32], index: 2, kind: input, shape index: {}]
  %s3 = inlined_call_operand.vmem [shape: f32[16,2], index: 3, kind: input, shape index: {}]
  %s4 = inlined_call_operand.hbm [shape: f32[16,128], index: 4, kind: output, shape index: {}]
  %s5 = sld [smem:[#allocation0]]
  $region26: #{tpu_custom_call.1} parent=0
    _
  %s7 = ssub.s32 1, %s5
  %s8 = scalar_select 0, %s7, %s5
  %9 = sst [smem:[#allocation2]] %s0
  $region1: #{tpu_custom_call.1} parent=0
    #allocation3 [shape = 'u8[8192]{0}', space=vmem, size = 0x2000, scoped, tag = 'output window, operand 0, single buffered']
    #allocation4 [shape = 's32[1]{0}', space=sflag, size = 0x4, scoped, tag = 'scoped memory for tpu_custom_call.1']
    %10 = vsyncpa [#allocation4], 0
    // Predicated region
    $region2: #{tpu_custom_call.1} parent=1 // pred_check
      _
    $region3: #{tpu_custom_call.1} parent=1 // pred_check_branch
      %12 = sbr.rel (0) target = $region5
    $region4: #{tpu_custom_call.1} parent=1 // pred_region
      _
    $region5: #{tpu_custom_call.1} parent=1 // pred_fallthru
      _
    // Predicated region
    $region6: #{tpu_custom_call.1} parent=1 // pred_check
      _
    $region7: #{tpu_custom_call.1} parent=1 // pred_check_branch
      %14 = sbr.rel (0) target = $region9
    $region8: #{tpu_custom_call.1} parent=1 // pred_region
      _
    $region9: #{tpu_custom_call.1} parent=1 // pred_fallthru
      _
    // Predicated region
    $region10: #{tpu_custom_call.1} parent=1 // pred_check
      _
    $region11: #{tpu_custom_call.1} parent=1 // pred_check_branch
      %16 = sbr.rel (0) target = $region13
    $region12: #{tpu_custom_call.1} parent=1 // pred_region
      _
    $region13: #{tpu_custom_call.1} parent=1 // pred_fallthru
      _
    // Predicated region
    $region14: #{tpu_custom_call.1} parent=1 // pred_check
      _
    $region15: #{tpu_custom_call.1} parent=1 // pred_check_branch
      %18 = sbr.rel (0) target = $region17
    $region16: #{tpu_custom_call.1} parent=1 // pred_region
      _
    $region17: #{tpu_custom_call.1} parent=1 // pred_fallthru
      _
    %v20 = vld [vmem:[%s1] sm:$0xf]
    %v21 = vld [vmem:[%s1 + $0x4] sm:$0xf]
    %v22 = vld [vmem:[%s2] sm:$0xf]
    %v23 = vld [vmem:[%s2 + $0x4] sm:$0xf]
    %v24 = vld [vmem:[%s2 + $0x8] sm:$0xf]
    %v25 = vld [vmem:[%s2 + $0xc] sm:$0xf]
    %v26 = vld [vmem:[%s2 + $0x10] sm:$0xf]
    %v27 = vld [vmem:[%s2 + $0x14] sm:$0xf]
    %v28 = vld [vmem:[%s2 + $0x18] sm:$0xf]
    %v29 = vld [vmem:[%s2 + $0x1c] sm:$0xf]
    %v30 = vld [vmem:[%s2 + $0x20] sm:$0xf]
    %v31 = vld [vmem:[%s2 + $0x24] sm:$0xf]
    %v32 = vld [vmem:[%s2 + $0x28] sm:$0xf]
    %v33 = vld [vmem:[%s2 + $0x2c] sm:$0xf]
    %v34 = vld [vmem:[%s2 + $0x30] sm:$0xf]
    %v35 = vld [vmem:[%s2 + $0x34] sm:$0xf]
    %v36 = vld [vmem:[%s2 + $0x38] sm:$0xf]
    %v37 = vld [vmem:[%s2 + $0x3c] sm:$0xf]
    %v40 = vunpack.c.l.b16 %v20
    %v41 = vunpack.c.l.b16 %v21
    %v42 = vpack.c.b16 %v41, %v40
    %v59 = vunpack.c.l.b16 %v22
    %v60 = vunpack.c.l.b16 %v23
    %v61 = vunpack.c.l.b16 %v24
    %v62 = vunpack.c.l.b16 %v25
    %v63 = vunpack.c.l.b16 %v26
    %v64 = vunpack.c.l.b16 %v27
    %v65 = vunpack.c.l.b16 %v28
    %v66 = vunpack.c.l.b16 %v29
    %v67 = vunpack.c.l.b16 %v30
    %v68 = vunpack.c.l.b16 %v31
    %v69 = vunpack.c.l.b16 %v32
    %v70 = vunpack.c.l.b16 %v33
    %v71 = vunpack.c.l.b16 %v34
    %v72 = vunpack.c.l.b16 %v35
    %v73 = vunpack.c.l.b16 %v36
    %v74 = vunpack.c.l.b16 %v37
    %v75 = vpack.c.b16 %v60, %v59
    %v76 = vpack.c.b16 %v62, %v61
    %v77 = vpack.c.b16 %v64, %v63
    %v78 = vpack.c.b16 %v66, %v65
    %v79 = vpack.c.b16 %v68, %v67
    %v80 = vpack.c.b16 %v70, %v69
    %v81 = vpack.c.b16 %v72, %v71
    %v82 = vpack.c.b16 %v74, %v73
    %vm83 = vcmask 261120
    %v85 = vsel %vm83, %v42, 0
    %v88 = vsel %vm83, %v75, 0
    %v91 = vsel %vm83, %v76, 0
    %v94 = vsel %vm83, %v77, 0
    %v97 = vsel %vm83, %v78, 0
    %v100 = vsel %vm83, %v79, 0
    %v103 = vsel %vm83, %v80, 0
    %v106 = vsel %vm83, %v81, 0
    %v109 = vsel %vm83, %v82, 0
    %111 = vmatprep.subr.bf16.mxu0 0
    %112 = vmatpush1.bf16.xpose.msra.mxu0 %v88
    %113 = vmatprep.subr.bf16.mxu0 0
    %114 = vmatpush1.bf16.xpose.msra.mxu0 %v91
    %115 = vmatprep.subr.bf16.mxu0 0
    %116 = vmatpush1.bf16.xpose.msra.mxu0 %v94
    %117 = vmatprep.subr.bf16.mxu0 0
    %118 = vmatpush1.bf16.xpose.msra.mxu0 %v97
    %119 = vmatprep.subr.bf16.mxu0 0
    %120 = vmatpush1.bf16.xpose.msra.mxu0 %v100
    %121 = vmatprep.subr.bf16.mxu0 0
    %122 = vmatpush1.bf16.xpose.msra.mxu0 %v103
    %123 = vmatprep.subr.bf16.mxu0 0
    %124 = vmatpush1.bf16.xpose.msra.mxu0 %v106
    %125 = vmatprep.subr.bf16.mxu0 0
    %126 = vmatpush1.bf16.xpose.msra.mxu0 %v109
    %127 = vmatprep.subr.bf16.mxu0 0
    %128 = vmatpush1.bf16.xpose.msra.mxu0 0
    %129 = vmatprep.subr.bf16.mxu0 0
    %130 = vmatpush1.bf16.xpose.msra.mxu0 0
    %131 = vmatprep.subr.bf16.mxu0 0
    %132 = vmatpush1.bf16.xpose.msra.mxu0 0
    %133 = vmatprep.subr.bf16.mxu0 0
    %134 = vmatpush1.bf16.xpose.msra.mxu0 0
    %135 = vmatprep.subr.bf16.mxu0 0
    %136 = vmatpush1.bf16.xpose.msra.mxu0 0
    %137 = vmatprep.subr.bf16.mxu0 0
    %138 = vmatpush1.bf16.xpose.msra.mxu0 0
    %139 = vmatprep.subr.bf16.mxu0 0
    %140 = vmatpush1.bf16.xpose.msra.mxu0 0
    %141 = vmatprep.subr.bf16.mxu0 0
    %142 = vmatpush1.bf16.xpose.msra.mxu0 0
    %143 = vmatprep.mubr.bf16.mxu0 0
    %144 = vmatmul.mubr.bf16.gmra.mrb[0].mxu0 %v85
    %v145 = vpop.f32.mrb[0].mxu0
    %v146 = vadd.f32 0.0, %v145
    %v147 = vpop.f32.mrb[0].mxu0
    %v148 = vpop.f32.mrb[0].mxu0
    %v149 = vadd.f32 0.0, %v148
    %v150 = vpop.f32.mrb[0].mxu0
    %151 = vdwg.mxu0
    %v152 = vld [vmem:[%s3] sm:$0xff]
    %v153 = vld [vmem:[%s3 + $0x8] sm:$0xff]
    %155 = vset.pattern.permute.xlu0 0
    %156 = vperm.xlu0 %155, %v152
    %v157 = vpop.permute.xlu0 %156
    %160 = vset.pattern.permute.xlu0 0
    %161 = vperm.xlu0 %160, %v153
    %v162 = vpop.permute.xlu0 %161
    %v164 = vmul.f32 %v146, %v157
    %v165 = vmul.f32 %v149, %v162
    %166 = vset.pattern.permute.xlu0 1
    %167 = vperm.xlu0 %166, %v152
    %v168 = vpop.permute.xlu0 %167
    %170 = vset.pattern.permute.xlu0 1
    %171 = vperm.xlu0 %170, %v153
    %v172 = vpop.permute.xlu0 %171
    %v174 = vadd.f32 %v164, %v168
    %v175 = vadd.f32 %v165, %v172
    %s176 = sld [smem:[#allocation2]]
    %vm177 = vcmp.gt.f32.partialorder %v174, 0.0
    %vm178 = vcmp.gt.f32.partialorder %v175, 0.0
    %v179 = vstv %s176
    %v180 = vmul.f32 %v179, %v174
    %v181 = vmul.f32 %v179, %v175
    %v182 = vsel %vm177, %v174, %v180
    %v183 = vsel %vm178, %v175, %v181
    %184 = vst [vmem:[#allocation3] sm:$0xff] %v182
    %185 = vst [vmem:[#allocation3 + $0x8] sm:$0xff] %v183
    // Predicated region
    $region18: #{tpu_custom_call.1} parent=1 // pred_check
      _
    $region19: #{tpu_custom_call.1} parent=1 // pred_check_branch
      %187 = sbr.rel (0) target = $region21
    $region20: #{tpu_custom_call.1} parent=1 // pred_region
      %s189 = ssub.s32 256, 256
      %190 = vsyncadd [#allocation4], %s189
      %s191 = sshll.u32 [#allocation3], 4
      %s192 = int_to_ptr.vmem [resolvable:$true] %s191
      %197 = dma.vmem_to_hbm [thread:$0]  %s192, 256, %s4, [#allocation4], 128, 128, 8
    $region21: #{tpu_custom_call.1} parent=1 // pred_fallthru
      _
    // Predicated region
    $region22: #{tpu_custom_call.1} parent=1 // pred_check
      _
    $region23: #{tpu_custom_call.1} parent=1 // pred_check_branch
      %199 = sbr.rel (0) target = $region25
    $region24: #{tpu_custom_call.1} parent=1 // pred_region
      %200 = dma.done [#allocation4], 256
    $region25: #{tpu_custom_call.1} parent=1 // pred_fallthru
      _
    %201 = vsyncpa [#allocation4], 1

</llo_original>
